<compile_context>
chip_gen: v5e
topology: v5e:2x2
jax: 0.10.0
libtpu: 0.0.40
codegen_flags: <defaults>
</compile_context>

<pallas_src>
import jax
import jax.numpy as jnp
from jax.experimental import pallas as pl
from jax.experimental.pallas import tpu as pltpu

LANE = 128


def _round_up(n, m=LANE):
    return ((n + m - 1) // m) * m


# ----------------------------------------------------------------------------
# Fused kernel: whole forward pass in one invocation (grid = ()).
# Inputs: x (B,Din), y (B,1) int32, 3 fc weights, fused exit weight, packed biases.
# Output: (1,128) row = [loss, ne1, ne2, ne3, 0, ...]
# ----------------------------------------------------------------------------
def _three_layer_bn_kernel(x_ref, y_ref, w1_ref, w2_ref, w3_ref, we_ref,
                           b_all_ref, out_ref):
    x = x_ref[...]                                # (B, Din) f32
    B = x.shape[0]
    inv_b = 1.0 / B

    o3 = we_ref.shape[1]                          # 3 * num_classes
    num_classes = o3 // 3

    b_all = b_all_ref[...]                        # (8, biasW) f32
    p0 = w1_ref.shape[1]
    p1 = w2_ref.shape[1]
    p2 = w3_ref.shape[1]

    def dense(h, w_ref, bias):
        return jnp.dot(h, w_ref[...], preferred_element_type=jnp.float32) + bias

    # Backbone (padded hidden dims; ReLU(0)=0 keeps padding exact).
    h1 = jnp.maximum(dense(x,  w1_ref, b_all[0:1, :p0]), 0.0)    # (B, p0)
    h2 = jnp.maximum(dense(h1, w2_ref, b_all[1:2, :p1]), 0.0)    # (B, p1)
    h3 = jnp.maximum(dense(h2, w3_ref, b_all[2:3, :p2]), 0.0)    # (B, p2)

    # All three exit heads as one block-diagonal matmul.
    h_cat = jnp.concatenate([h1, h2, h3], axis=1)                 # (B, p0+p1+p2)
    logits_all = dense(h_cat, we_ref, b_all[3:4, :o3])            # (B, 3*O)

    # One-hot labels built in-kernel from integer labels.
    labels = y_ref[...]                                           # (B, 1) int32
    class_ids = jax.lax.broadcasted_iota(jnp.int32, (B, num_classes), 1)
    onehot = (class_ids == labels).astype(jnp.float32)            # (B, O)

    def exit_stats(logits):
        # softmax over classes (dim=1), its neg-entropy, and mean cross-entropy vs y.
        m = jnp.max(logits, axis=1, keepdims=True)                # (B,1)
        z = logits - m
        e = jnp.exp(z)
        s = jnp.sum(e, axis=1, keepdims=True)                     # (B,1)
        log_s = jnp.log(s)
        log_sm = z - log_s
        sm = jnp.exp(log_sm)                                      # EUP exp; exact
        ne = jnp.sum(jnp.sum(sm * log_sm, axis=1, keepdims=True),
                     axis=0, keepdims=True) * inv_b               # (1,1)
        lse = m + log_s                                           # (B,1)
        logit_y = jnp.sum(onehot * logits, axis=1, keepdims=True) # (B,1)
        ce = jnp.sum(lse - logit_y, axis=0, keepdims=True) * inv_b
        return ne, ce

    ne1, ce1 = exit_stats(logits_all[:, 0:num_classes])
    ne2, ce2 = exit_stats(logits_all[:, num_classes:2 * num_classes])
    ne3, ce3 = exit_stats(logits_all[:, 2 * num_classes:3 * num_classes])

    sw_w = b_all[4:5, 0:1]                                        # (1,1)
    sw_b = b_all[4:5, 1:2]                                        # (1,1)
    # (loss_1+loss_2+loss_3)/3 with loss_i = sw_w*ce_i + sw_b (scale_weight_1 reused
    # for every exit, faithful to the original module).
    loss = (sw_w * (ce1 + ce2 + ce3) + 3.0 * sw_b) * (1.0 / 3.0)  # (1,1)

    # Single lane-dense output row: [loss, ne1, ne2, ne3, 0...]
    lane = jax.lax.broadcasted_iota(jnp.int32, (1, LANE), 1)
    row = jnp.where(lane == 0, loss, 0.0)
    row = jnp.where(lane == 1, ne1, row)
    row = jnp.where(lane == 2, ne2, row)
    row = jnp.where(lane == 3, ne3, row)
    out_ref[...] = row


# ----------------------------------------------------------------------------
# One-time parameter preparation (padding, fused block-diag exit weight, packed
# biases). Runs ONCE; the per-call wrapper does no layout work.
# ----------------------------------------------------------------------------
def prepare_kernel_params(params, input_dim, output_dim, dims):
    d0, d1, d2 = dims
    O = output_dim
    p0, p1, p2 = _round_up(d0), _round_up(d1), _round_up(d2)
    f32 = jnp.float32

    w1 = jnp.zeros((input_dim, p0), f32).at[:, :d0].set(params["fc1_w"])
    w2 = jnp.zeros((p0, p1), f32).at[:d0, :d1].set(params["fc2_w"])
    w3 = jnp.zeros((p1, p2), f32).at[:d1, :d2].set(params["fc3_w"])

    # Block-diagonal fused exit weight: (p0+p1+p2, 3*O)
    we = jnp.zeros((p0 + p1 + p2, 3 * O), f32)
    we = we.at[:d0, 0:O].set(params["exit1_w"])
    we = we.at[p0:p0 + d1, O:2 * O].set(params["exit2_w"])
    we = we.at[p0 + p1:p0 + p1 + d2, 2 * O:3 * O].set(params["exit3_w"])

    bias_w = max(p0, p1, p2, _round_up(3 * O), LANE)
    b_all = jnp.zeros((8, bias_w), f32)
    b_all = b_all.at[0, :d0].set(params["fc1_b"])
    b_all = b_all.at[1, :d1].set(params["fc2_b"])
    b_all = b_all.at[2, :d2].set(params["fc3_b"])
    b_all = b_all.at[3, 0:O].set(params["exit1_b"])
    b_all = b_all.at[3, O:2 * O].set(params["exit2_b"])
    b_all = b_all.at[3, 2 * O:3 * O].set(params["exit3_b"])
    b_all = b_all.at[4, 0].set(params["sw1_w"][0, 0])
    b_all = b_all.at[4, 1].set(params["sw1_b"][0])

    return {"w1": w1, "w2": w2, "w3": w3, "we": we, "b_all": b_all}


# ----------------------------------------------------------------------------
# Per-call wrapper (jitted): no transposes / reshapes of parameters here.
# ----------------------------------------------------------------------------
@jax.jit
def three_layer_bn_forward(kparams, x, y):
    B = x.shape[0]
    y2 = y.astype(jnp.int32).reshape(B, 1)

    vmem = pl.BlockSpec(memory_space=pltpu.MemorySpace.VMEM)
    out = pl.pallas_call(
        _three_layer_bn_kernel,
        out_shape=jax.ShapeDtypeStruct((1, LANE), jnp.float32),
        in_specs=[vmem] * 7,
        out_specs=vmem,
    )(x, y2, kparams["w1"], kparams["w2"], kparams["w3"], kparams["we"],
      kparams["b_all"])

    loss = out[0:1, 0:1]          # (1,1), matches module's loss tensor shape
    neg_ent = out[0, 1:4]         # (3,)
    return loss, neg_ent


# ----------------------------------------------------------------------------
# Pure-JAX reference (for correctness check) — uses the original (unpadded) params.
# ----------------------------------------------------------------------------
def reference_forward(params, x, y):
    B = x.shape[0]
    O = params["exit1_w"].shape[1]
    onehot = jax.nn.one_hot(y, O, dtype=jnp.float32)

    def exit_stats(logits):
        log_sm = jax.nn.log_softmax(logits, axis=1)
        sm = jnp.exp(log_sm)
        ne = jnp.sum(sm * log_sm) / B
        ce = -jnp.sum(onehot * log_sm) / B
        return ne, ce

    h1 = jax.nn.relu(x @ params["fc1_w"] + params["fc1_b"])
    ne1, ce1 = exit_stats(h1 @ params["exit1_w"] + params["exit1_b"])
    h2 = jax.nn.relu(h1 @ params["fc2_w"] + params["fc2_b"])
    ne2, ce2 = exit_stats(h2 @ params["exit2_w"] + params["exit2_b"])
    h3 = jax.nn.relu(h2 @ params["fc3_w"] + params["fc3_b"])
    ne3, ce3 = exit_stats(h3 @ params["exit3_w"] + params["exit3_b"])

    sw_w = params["sw1_w"][0, 0]
    sw_b = params["sw1_b"][0]
    loss = ((sw_w * ce1 + sw_b) + (sw_w * ce2 + sw_b) + (sw_w * ce3 + sw_b)) / 3.0
    return jnp.reshape(loss, (1, 1)), jnp.stack([ne1, ne2, ne3])


# ----------------------------------------------------------------------------
# Deterministic parameter init (mirrors module __init__); weights stored (in, out).
# ----------------------------------------------------------------------------
def init_params(key, input_dim, output_dim, dims, init_exit_weights):
    d0, d1, d2 = dims
    ks = jax.random.split(key, 12)

    def kaiming(k, in_f, out_f):      # kaiming_normal_, fan_in, gain sqrt(2); (in,out) layout
        return jax.random.normal(k, (in_f, out_f), jnp.float32) * jnp.sqrt(2.0 / in_f)

    def unif(k, n, fan_in):           # default nn.Linear bias init
        b = 1.0 / jnp.sqrt(fan_in)
        return jax.random.uniform(k, (n,), jnp.float32, -b, b)

    return {
        "fc1_w": kaiming(ks[0], input_dim, d0), "fc1_b": unif(ks[1], d0, input_dim),
        "exit1_w": kaiming(ks[2], d0, output_dim), "exit1_b": unif(ks[3], output_dim, d0),
        "fc2_w": kaiming(ks[4], d0, d1), "fc2_b": unif(ks[5], d1, d0),
        "exit2_w": kaiming(ks[6], d1, output_dim), "exit2_b": unif(ks[7], output_dim, d1),
        "fc3_w": kaiming(ks[8], d1, d2), "fc3_b": unif(ks[9], d2, d1),
        "exit3_w": kaiming(ks[10], d2, output_dim), "exit3_b": unif(ks[11], output_dim, d2),
        "sw1_w": jnp.array([[init_exit_weights[0]]], jnp.float32),
        "sw1_b": jnp.array([0.0], jnp.float32),
        # scale_weight_2 / scale_weight_3 exist in the module but forward() never uses them.
        "sw2_w": jnp.array([[init_exit_weights[1]]], jnp.float32),
        "sw2_b": jnp.array([0.0], jnp.float32),
        "sw3_w": jnp.array([[init_exit_weights[2]]], jnp.float32),
        "sw3_b": jnp.array([0.0], jnp.float32),
    }


if __name__ == "__main__":
    B = 8
    INPUT_DIM = 128
    DIMS = (128, 64, 32)
    OUT = 16
    INIT_EXIT_WEIGHTS = (0.3, 0.3, 0.4)

    key = jax.random.PRNGKey(0)
    pkey, xkey, ykey = jax.random.split(key, 3)
    params = init_params(pkey, INPUT_DIM, OUT, DIMS, INIT_EXIT_WEIGHTS)
    kparams = prepare_kernel_params(params, INPUT_DIM, OUT, DIMS)

    x = jax.random.normal(xkey, (B, INPUT_DIM), jnp.float32)
    y = jax.random.randint(ykey, (B,), 0, OUT)

    loss, neg_ent = jax.block_until_ready(three_layer_bn_forward(kparams, x, y))

    ref_loss, ref_ne = reference_forward(params, x, y)
    assert loss.shape == (1, 1), loss.shape
    assert jnp.allclose(loss, ref_loss, atol=1e-3, rtol=1e-3), (
        float(jnp.max(jnp.abs(loss - ref_loss))))
    assert jnp.allclose(neg_ent, ref_ne, atol=1e-3, rtol=1e-3), (
        float(jnp.max(jnp.abs(neg_ent - ref_ne))))

    # Mirror the module's return structure: (loss tensor (1,1), [float, float, float]).
    result = (loss, [float(neg_ent[0]), float(neg_ent[1]), float(neg_ent[2])])

    print("KERNEL_OK")
</pallas_src>

<mosaic_0001>
module attributes {stable_mosaic.version = 11 : i64} {
  func.func @_three_layer_bn_kernel(%arg0: memref<8x128xf32, #tpu.memory_space<vmem>>, %arg1: memref<8x1xi32, #tpu.memory_space<vmem>>, %arg2: memref<128x128xf32, #tpu.memory_space<vmem>>, %arg3: memref<128x128xf32, #tpu.memory_space<vmem>>, %arg4: memref<128x128xf32, #tpu.memory_space<vmem>>, %arg5: memref<384x48xf32, #tpu.memory_space<vmem>>, %arg6: memref<8x128xf32, #tpu.memory_space<vmem>>, %arg7: memref<1x128xf32, #tpu.memory_space<vmem>>) attributes {dimension_semantics = [], scalar_prefetch = 0 : i64, scratch_operands = 0 : i64, tpu.core_type = #tpu.core_type<tc>} {
    %c0 = arith.constant 0 : index
    %c0_0 = arith.constant 0 : index
    %0 = vector.load %arg0[%c0, %c0_0] : memref<8x128xf32, #tpu.memory_space<vmem>>, vector<8x128xf32>
    %c0_1 = arith.constant 0 : index
    %c0_2 = arith.constant 0 : index
    %1 = vector.load %arg6[%c0_1, %c0_2] : memref<8x128xf32, #tpu.memory_space<vmem>>, vector<8x128xf32>
    %2 = vector.extract_strided_slice %1 {offsets = [0, 0], sizes = [1, 128], strides = [1, 1]} : vector<8x128xf32> to vector<1x128xf32>
    %c0_3 = arith.constant 0 : index
    %c0_4 = arith.constant 0 : index
    %3 = vector.load %arg2[%c0_3, %c0_4] : memref<128x128xf32, #tpu.memory_space<vmem>>, vector<128x128xf32>
    %cst = arith.constant dense<0.000000e+00> : vector<8x128xf32>
    %4 = tpu.matmul %0, %3, %cst {dimension_numbers = #tpu.dot_dimension_numbers<[1], [0], [0], [1], [0, 0, 1, 1], [], []>} : vector<8x128xf32>, vector<128x128xf32>, vector<8x128xf32> -> vector<8x128xf32>
    %5 = vector.broadcast %2 : vector<1x128xf32> to vector<8x128xf32>
    %6 = arith.addf %4, %5 : vector<8x128xf32>
    %cst_5 = arith.constant 0.000000e+00 : f32
    %7 = vector.broadcast %cst_5 : f32 to vector<8x128xf32>
    %8 = arith.maximumf %6, %7 : vector<8x128xf32>
    %9 = vector.extract_strided_slice %1 {offsets = [1, 0], sizes = [1, 128], strides = [1, 1]} : vector<8x128xf32> to vector<1x128xf32>
    %c0_6 = arith.constant 0 : index
    %c0_7 = arith.constant 0 : index
    %10 = vector.load %arg3[%c0_6, %c0_7] : memref<128x128xf32, #tpu.memory_space<vmem>>, vector<128x128xf32>
    %cst_8 = arith.constant dense<0.000000e+00> : vector<8x128xf32>
    %11 = tpu.matmul %8, %10, %cst_8 {dimension_numbers = #tpu.dot_dimension_numbers<[1], [0], [0], [1], [0, 0, 1, 1], [], []>} : vector<8x128xf32>, vector<128x128xf32>, vector<8x128xf32> -> vector<8x128xf32>
    %12 = vector.broadcast %9 : vector<1x128xf32> to vector<8x128xf32>
    %13 = arith.addf %11, %12 : vector<8x128xf32>
    %cst_9 = arith.constant 0.000000e+00 : f32
    %14 = vector.broadcast %cst_9 : f32 to vector<8x128xf32>
    %15 = arith.maximumf %13, %14 : vector<8x128xf32>
    %16 = vector.extract_strided_slice %1 {offsets = [2, 0], sizes = [1, 128], strides = [1, 1]} : vector<8x128xf32> to vector<1x128xf32>
    %c0_10 = arith.constant 0 : index
    %c0_11 = arith.constant 0 : index
    %17 = vector.load %arg4[%c0_10, %c0_11] : memref<128x128xf32, #tpu.memory_space<vmem>>, vector<128x128xf32>
    %cst_12 = arith.constant dense<0.000000e+00> : vector<8x128xf32>
    %18 = tpu.matmul %15, %17, %cst_12 {dimension_numbers = #tpu.dot_dimension_numbers<[1], [0], [0], [1], [0, 0, 1, 1], [], []>} : vector<8x128xf32>, vector<128x128xf32>, vector<8x128xf32> -> vector<8x128xf32>
    %19 = vector.broadcast %16 : vector<1x128xf32> to vector<8x128xf32>
    %20 = arith.addf %18, %19 : vector<8x128xf32>
    %cst_13 = arith.constant 0.000000e+00 : f32
    %21 = vector.broadcast %cst_13 : f32 to vector<8x128xf32>
    %22 = arith.maximumf %20, %21 : vector<8x128xf32>
    %23 = tpu.concatenate %8, %15, %22 in 1 : vector<8x128xf32>, vector<8x128xf32>, vector<8x128xf32> -> vector<8x384xf32>
    %24 = vector.extract_strided_slice %1 {offsets = [3, 0], sizes = [1, 48], strides = [1, 1]} : vector<8x128xf32> to vector<1x48xf32>
    %c0_14 = arith.constant 0 : index
    %c0_15 = arith.constant 0 : index
    %25 = vector.load %arg5[%c0_14, %c0_15] : memref<384x48xf32, #tpu.memory_space<vmem>>, vector<384x48xf32>
    %cst_16 = arith.constant dense<0.000000e+00> : vector<8x48xf32>
    %26 = tpu.matmul %23, %25, %cst_16 {dimension_numbers = #tpu.dot_dimension_numbers<[1], [0], [0], [1], [0, 0, 1, 1], [], []>} : vector<8x384xf32>, vector<384x48xf32>, vector<8x48xf32> -> vector<8x48xf32>
    %27 = vector.broadcast %24 : vector<1x48xf32> to vector<8x48xf32>
    %28 = arith.addf %26, %27 : vector<8x48xf32>
    %c0_17 = arith.constant 0 : index
    %c0_18 = arith.constant 0 : index
    %29 = vector.load %arg1[%c0_17, %c0_18] : memref<8x1xi32, #tpu.memory_space<vmem>>, vector<8x1xi32>
    %30 = tpu.iota {dimensions = array<i32: 1>} : vector<8x16xi32>
    %31 = vector.broadcast %29 : vector<8x1xi32> to vector<8x16xi32>
    %32 = arith.cmpi eq, %30, %31 : vector<8x16xi32>
    %33 = arith.extui %32 : vector<8x16xi1> to vector<8x16xi32>
    %34 = arith.sitofp %33 : vector<8x16xi32> to vector<8x16xf32>
    %35 = vector.extract_strided_slice %28 {offsets = [0, 0], sizes = [8, 16], strides = [1, 1]} : vector<8x48xf32> to vector<8x16xf32>
    %cst_19 = arith.constant dense<0xFF800000> : vector<8xf32>
    %36 = vector.multi_reduction <maximumf>, %35, %cst_19 [1] : vector<8x16xf32> to vector<8xf32>
    %37 = vector.shape_cast %36 : vector<8xf32> to vector<8x1xf32>
    %38 = vector.broadcast %37 : vector<8x1xf32> to vector<8x16xf32>
    %39 = arith.subf %35, %38 : vector<8x16xf32>
    %40 = math.exp %39 : vector<8x16xf32>
    %cst_20 = arith.constant dense<0.000000e+00> : vector<8xf32>
    %41 = vector.multi_reduction <add>, %40, %cst_20 [1] : vector<8x16xf32> to vector<8xf32>
    %42 = vector.shape_cast %41 : vector<8xf32> to vector<8x1xf32>
    %43 = math.log %42 : vector<8x1xf32>
    %44 = vector.broadcast %43 : vector<8x1xf32> to vector<8x16xf32>
    %45 = arith.subf %39, %44 : vector<8x16xf32>
    %46 = math.exp %45 : vector<8x16xf32>
    %47 = arith.mulf %46, %45 : vector<8x16xf32>
    %cst_21 = arith.constant dense<0.000000e+00> : vector<8xf32>
    %48 = vector.multi_reduction <add>, %47, %cst_21 [1] : vector<8x16xf32> to vector<8xf32>
    %49 = vector.shape_cast %48 : vector<8xf32> to vector<8x1xf32>
    %cst_22 = arith.constant dense<0.000000e+00> : vector<1xf32>
    %50 = vector.multi_reduction <add>, %49, %cst_22 [0] : vector<8x1xf32> to vector<1xf32>
    %51 = vector.shape_cast %50 : vector<1xf32> to vector<1x1xf32>
    %cst_23 = arith.constant 1.250000e-01 : f32
    %52 = vector.broadcast %cst_23 : f32 to vector<1x1xf32>
    %53 = arith.mulf %51, %52 : vector<1x1xf32>
    %54 = arith.addf %37, %43 : vector<8x1xf32>
    %55 = arith.mulf %34, %35 : vector<8x16xf32>
    %cst_24 = arith.constant dense<0.000000e+00> : vector<8xf32>
    %56 = vector.multi_reduction <add>, %55, %cst_24 [1] : vector<8x16xf32> to vector<8xf32>
    %57 = vector.shape_cast %56 : vector<8xf32> to vector<8x1xf32>
    %58 = arith.subf %54, %57 : vector<8x1xf32>
    %cst_25 = arith.constant dense<0.000000e+00> : vector<1xf32>
    %59 = vector.multi_reduction <add>, %58, %cst_25 [0] : vector<8x1xf32> to vector<1xf32>
    %60 = vector.shape_cast %59 : vector<1xf32> to vector<1x1xf32>
    %cst_26 = arith.constant 1.250000e-01 : f32
    %61 = vector.broadcast %cst_26 : f32 to vector<1x1xf32>
    %62 = arith.mulf %60, %61 : vector<1x1xf32>
    %63 = vector.extract_strided_slice %28 {offsets = [0, 16], sizes = [8, 16], strides = [1, 1]} : vector<8x48xf32> to vector<8x16xf32>
    %cst_27 = arith.constant dense<0xFF800000> : vector<8xf32>
    %64 = vector.multi_reduction <maximumf>, %63, %cst_27 [1] : vector<8x16xf32> to vector<8xf32>
    %65 = vector.shape_cast %64 : vector<8xf32> to vector<8x1xf32>
    %66 = vector.broadcast %65 : vector<8x1xf32> to vector<8x16xf32>
    %67 = arith.subf %63, %66 : vector<8x16xf32>
    %68 = math.exp %67 : vector<8x16xf32>
    %cst_28 = arith.constant dense<0.000000e+00> : vector<8xf32>
    %69 = vector.multi_reduction <add>, %68, %cst_28 [1] : vector<8x16xf32> to vector<8xf32>
    %70 = vector.shape_cast %69 : vector<8xf32> to vector<8x1xf32>
    %71 = math.log %70 : vector<8x1xf32>
    %72 = vector.broadcast %71 : vector<8x1xf32> to vector<8x16xf32>
    %73 = arith.subf %67, %72 : vector<8x16xf32>
    %74 = math.exp %73 : vector<8x16xf32>
    %75 = arith.mulf %74, %73 : vector<8x16xf32>
    %cst_29 = arith.constant dense<0.000000e+00> : vector<8xf32>
    %76 = vector.multi_reduction <add>, %75, %cst_29 [1] : vector<8x16xf32> to vector<8xf32>
    %77 = vector.shape_cast %76 : vector<8xf32> to vector<8x1xf32>
    %cst_30 = arith.constant dense<0.000000e+00> : vector<1xf32>
    %78 = vector.multi_reduction <add>, %77, %cst_30 [0] : vector<8x1xf32> to vector<1xf32>
    %79 = vector.shape_cast %78 : vector<1xf32> to vector<1x1xf32>
    %cst_31 = arith.constant 1.250000e-01 : f32
    %80 = vector.broadcast %cst_31 : f32 to vector<1x1xf32>
    %81 = arith.mulf %79, %80 : vector<1x1xf32>
    %82 = arith.addf %65, %71 : vector<8x1xf32>
    %83 = arith.mulf %34, %63 : vector<8x16xf32>
    %cst_32 = arith.constant dense<0.000000e+00> : vector<8xf32>
    %84 = vector.multi_reduction <add>, %83, %cst_32 [1] : vector<8x16xf32> to vector<8xf32>
    %85 = vector.shape_cast %84 : vector<8xf32> to vector<8x1xf32>
    %86 = arith.subf %82, %85 : vector<8x1xf32>
    %cst_33 = arith.constant dense<0.000000e+00> : vector<1xf32>
    %87 = vector.multi_reduction <add>, %86, %cst_33 [0] : vector<8x1xf32> to vector<1xf32>
    %88 = vector.shape_cast %87 : vector<1xf32> to vector<1x1xf32>
    %cst_34 = arith.constant 1.250000e-01 : f32
    %89 = vector.broadcast %cst_34 : f32 to vector<1x1xf32>
    %90 = arith.mulf %88, %89 : vector<1x1xf32>
    %91 = vector.extract_strided_slice %28 {offsets = [0, 32], sizes = [8, 16], strides = [1, 1]} : vector<8x48xf32> to vector<8x16xf32>
    %cst_35 = arith.constant dense<0xFF800000> : vector<8xf32>
    %92 = vector.multi_reduction <maximumf>, %91, %cst_35 [1] : vector<8x16xf32> to vector<8xf32>
    %93 = vector.shape_cast %92 : vector<8xf32> to vector<8x1xf32>
    %94 = vector.broadcast %93 : vector<8x1xf32> to vector<8x16xf32>
    %95 = arith.subf %91, %94 : vector<8x16xf32>
    %96 = math.exp %95 : vector<8x16xf32>
    %cst_36 = arith.constant dense<0.000000e+00> : vector<8xf32>
    %97 = vector.multi_reduction <add>, %96, %cst_36 [1] : vector<8x16xf32> to vector<8xf32>
    %98 = vector.shape_cast %97 : vector<8xf32> to vector<8x1xf32>
    %99 = math.log %98 : vector<8x1xf32>
    %100 = vector.broadcast %99 : vector<8x1xf32> to vector<8x16xf32>
    %101 = arith.subf %95, %100 : vector<8x16xf32>
    %102 = math.exp %101 : vector<8x16xf32>
    %103 = arith.mulf %102, %101 : vector<8x16xf32>
    %cst_37 = arith.constant dense<0.000000e+00> : vector<8xf32>
    %104 = vector.multi_reduction <add>, %103, %cst_37 [1] : vector<8x16xf32> to vector<8xf32>
    %105 = vector.shape_cast %104 : vector<8xf32> to vector<8x1xf32>
    %cst_38 = arith.constant dense<0.000000e+00> : vector<1xf32>
    %106 = vector.multi_reduction <add>, %105, %cst_38 [0] : vector<8x1xf32> to vector<1xf32>
    %107 = vector.shape_cast %106 : vector<1xf32> to vector<1x1xf32>
    %cst_39 = arith.constant 1.250000e-01 : f32
    %108 = vector.broadcast %cst_39 : f32 to vector<1x1xf32>
    %109 = arith.mulf %107, %108 : vector<1x1xf32>
    %110 = arith.addf %93, %99 : vector<8x1xf32>
    %111 = arith.mulf %34, %91 : vector<8x16xf32>
    %cst_40 = arith.constant dense<0.000000e+00> : vector<8xf32>
    %112 = vector.multi_reduction <add>, %111, %cst_40 [1] : vector<8x16xf32> to vector<8xf32>
    %113 = vector.shape_cast %112 : vector<8xf32> to vector<8x1xf32>
    %114 = arith.subf %110, %113 : vector<8x1xf32>
    %cst_41 = arith.constant dense<0.000000e+00> : vector<1xf32>
    %115 = vector.multi_reduction <add>, %114, %cst_41 [0] : vector<8x1xf32> to vector<1xf32>
    %116 = vector.shape_cast %115 : vector<1xf32> to vector<1x1xf32>
    %cst_42 = arith.constant 1.250000e-01 : f32
    %117 = vector.broadcast %cst_42 : f32 to vector<1x1xf32>
    %118 = arith.mulf %116, %117 : vector<1x1xf32>
    %119 = vector.extract_strided_slice %1 {offsets = [4, 0], sizes = [1, 1], strides = [1, 1]} : vector<8x128xf32> to vector<1x1xf32>
    %120 = vector.extract_strided_slice %1 {offsets = [4, 1], sizes = [1, 1], strides = [1, 1]} : vector<8x128xf32> to vector<1x1xf32>
    %121 = arith.addf %62, %90 : vector<1x1xf32>
    %122 = arith.addf %121, %118 : vector<1x1xf32>
    %123 = arith.mulf %119, %122 : vector<1x1xf32>
    %cst_43 = arith.constant 3.000000e+00 : f32
    %124 = vector.broadcast %cst_43 : f32 to vector<1x1xf32>
    %125 = arith.mulf %124, %120 : vector<1x1xf32>
    %126 = arith.addf %123, %125 : vector<1x1xf32>
    %cst_44 = arith.constant 0.333333343 : f32
    %127 = vector.broadcast %cst_44 : f32 to vector<1x1xf32>
    %128 = arith.mulf %126, %127 : vector<1x1xf32>
    %129 = tpu.iota {dimensions = array<i32: 1>} : vector<1x128xi32>
    %c0_i32 = arith.constant 0 : i32
    %130 = vector.broadcast %c0_i32 : i32 to vector<1x128xi32>
    %131 = arith.cmpi eq, %129, %130 : vector<1x128xi32>
    %cst_45 = arith.constant 0.000000e+00 : f32
    %132 = vector.shape_cast %128 : vector<1x1xf32> to vector<1x1xf32>
    %133 = vector.broadcast %132 : vector<1x1xf32> to vector<1x128xf32>
    %134 = vector.broadcast %cst_45 : f32 to vector<1x128xf32>
    %135 = arith.select %131, %133, %134 : vector<1x128xi1>, vector<1x128xf32>
    %c1_i32 = arith.constant 1 : i32
    %136 = vector.broadcast %c1_i32 : i32 to vector<1x128xi32>
    %137 = arith.cmpi eq, %129, %136 : vector<1x128xi32>
    %138 = vector.shape_cast %53 : vector<1x1xf32> to vector<1x1xf32>
    %139 = vector.broadcast %138 : vector<1x1xf32> to vector<1x128xf32>
    %140 = arith.select %137, %139, %135 : vector<1x128xi1>, vector<1x128xf32>
    %c2_i32 = arith.constant 2 : i32
    %141 = vector.broadcast %c2_i32 : i32 to vector<1x128xi32>
    %142 = arith.cmpi eq, %129, %141 : vector<1x128xi32>
    %143 = vector.shape_cast %81 : vector<1x1xf32> to vector<1x1xf32>
    %144 = vector.broadcast %143 : vector<1x1xf32> to vector<1x128xf32>
    %145 = arith.select %142, %144, %140 : vector<1x128xi1>, vector<1x128xf32>
    %c3_i32 = arith.constant 3 : i32
    %146 = vector.broadcast %c3_i32 : i32 to vector<1x128xi32>
    %147 = arith.cmpi eq, %129, %146 : vector<1x128xi32>
    %148 = vector.shape_cast %109 : vector<1x1xf32> to vector<1x1xf32>
    %149 = vector.broadcast %148 : vector<1x1xf32> to vector<1x128xf32>
    %150 = arith.select %147, %149, %145 : vector<1x128xi1>, vector<1x128xf32>
    %c0_46 = arith.constant 0 : index
    %c0_47 = arith.constant 0 : index
    %151 = vector.load %arg7[%c0_46, %c0_47] : memref<1x128xf32, #tpu.memory_space<vmem>>, vector<1x128xf32>
    tpu.vector_store %arg7[%c0_46, %c0_47], %150 {strides = array<i32>} : memref<1x128xf32, #tpu.memory_space<vmem>>, vector<1x128xf32>,
    return
  }
}

</mosaic_0001>

<llo_original>
// kernel: three_layer_bn_forward.1
$region0: #{three_layer_bn_forward.1}
  #allocation0 [shape = 'u32[]', space=smem, size = 0x4, offset = 0x4, fixed_abs, tag = 'smem constant byte address 0x4 - core index']
  #allocation1 [shape = 'u32[72,128]{1,0:T(1,128)}', space=vmem, size = 0x9000, scoped, tag = 'internal scratch']
  %s0 = inlined_call_operand.vmem [shape: f32[8,128], index: 0, kind: input, shape index: {}]
  %s1 = inlined_call_operand.vmem [shape: s32[8,1], index: 1, kind: input, shape index: {}]
  %s2 = inlined_call_operand.vmem [shape: f32[128,128], index: 2, kind: input, shape index: {}]
  %s3 = inlined_call_operand.vmem [shape: f32[128,128], index: 3, kind: input, shape index: {}]
  %s4 = inlined_call_operand.vmem [shape: f32[128,128], index: 4, kind: input, shape index: {}]
  %s5 = inlined_call_operand.vmem [shape: f32[384,48], index: 5, kind: input, shape index: {}]
  %s6 = inlined_call_operand.vmem [shape: f32[8,128], index: 6, kind: input, shape index: {}]
  %s7 = inlined_call_operand.vmem [shape: f32[1,128], index: 7, kind: output, shape index: {}]
  %s8 = sld [smem:[#allocation0]]
  $region38: #{three_layer_bn_forward.1} parent=0
    _
  %s10 = ssub.s32 1, %s8
  %s11 = scalar_select 0, %s10, %s8
  // Predicated region
  $region2: #{three_layer_bn_forward.1} parent=0 // pred_check
    _
  $region3: #{three_layer_bn_forward.1} parent=0 // pred_check_branch
    %13 = sbr.rel (0) target = $region5
  $region4: #{three_layer_bn_forward.1} parent=0 // pred_region
    _
  $region5: #{three_layer_bn_forward.1} parent=0 // pred_fallthru
    _
  // Predicated region
  $region6: #{three_layer_bn_forward.1} parent=0 // pred_check
    _
  $region7: #{three_layer_bn_forward.1} parent=0 // pred_check_branch
    %15 = sbr.rel (0) target = $region9
  $region8: #{three_layer_bn_forward.1} parent=0 // pred_region
    _
  $region9: #{three_layer_bn_forward.1} parent=0 // pred_fallthru
    _
  // Predicated region
  $region10: #{three_layer_bn_forward.1} parent=0 // pred_check
    _
  $region11: #{three_layer_bn_forward.1} parent=0 // pred_check_branch
    %17 = sbr.rel (0) target = $region13
  $region12: #{three_layer_bn_forward.1} parent=0 // pred_region
    _
  $region13: #{three_layer_bn_forward.1} parent=0 // pred_fallthru
    _
  // Predicated region
  $region14: #{three_layer_bn_forward.1} parent=0 // pred_check
    _
  $region15: #{three_layer_bn_forward.1} parent=0 // pred_check_branch
    %19 = sbr.rel (0) target = $region17
  $region16: #{three_layer_bn_forward.1} parent=0 // pred_region
    _
  $region17: #{three_layer_bn_forward.1} parent=0 // pred_fallthru
    _
  // Predicated region
  $region18: #{three_layer_bn_forward.1} parent=0 // pred_check
    _
  $region19: #{three_layer_bn_forward.1} parent=0 // pred_check_branch
    %21 = sbr.rel (0) target = $region21
  $region20: #{three_layer_bn_forward.1} parent=0 // pred_region
    _
  $region21: #{three_layer_bn_forward.1} parent=0 // pred_fallthru
    _
  // Predicated region
  $region22: #{three_layer_bn_forward.1} parent=0 // pred_check
    _
  $region23: #{three_layer_bn_forward.1} parent=0 // pred_check_branch
    %23 = sbr.rel (0) target = $region25
  $region24: #{three_layer_bn_forward.1} parent=0 // pred_region
    _
  $region25: #{three_layer_bn_forward.1} parent=0 // pred_fallthru
    _
  // Predicated region
  $region26: #{three_layer_bn_forward.1} parent=0 // pred_check
    _
  $region27: #{three_layer_bn_forward.1} parent=0 // pred_check_branch
    %25 = sbr.rel (0) target = $region29
  $region28: #{three_layer_bn_forward.1} parent=0 // pred_region
    _
  $region29: #{three_layer_bn_forward.1} parent=0 // pred_fallthru
    _
  %v26 = vld [vmem:[%s0] sm:$0xff]
  %v27 = vld [vmem:[%s6] sm:$0xff]
  %v28 = vld [vmem:[%s2] sm:$0xff]
  %v29 = vld [vmem:[%s2 + $0x8] sm:$0xff]
  %v30 = vld [vmem:[%s2 + $0x10] sm:$0xff]
  %v31 = vld [vmem:[%s2 + $0x18] sm:$0xff]
  %v32 = vld [vmem:[%s2 + $0x20] sm:$0xff]
  %v33 = vld [vmem:[%s2 + $0x28] sm:$0xff]
  %v34 = vld [vmem:[%s2 + $0x30] sm:$0xff]
  %v35 = vld [vmem:[%s2 + $0x38] sm:$0xff]
  %v36 = vld [vmem:[%s2 + $0x40] sm:$0xff]
  %v37 = vld [vmem:[%s2 + $0x48] sm:$0xff]
  %v38 = vld [vmem:[%s2 + $0x50] sm:$0xff]
  %v39 = vld [vmem:[%s2 + $0x58] sm:$0xff]
  %v40 = vld [vmem:[%s2 + $0x60] sm:$0xff]
  %v41 = vld [vmem:[%s2 + $0x68] sm:$0xff]
  %v42 = vld [vmem:[%s2 + $0x70] sm:$0xff]
  %v43 = vld [vmem:[%s2 + $0x78] sm:$0xff]
  %v44 = vperm.slane %v27, 0
  %45 = vmatpush.msra.mxu0 %v43
  %46 = vmatpush.msra.mxu0 %v42
  %47 = vmatpush.msra.mxu0 %v41
  %48 = vmatpush.msra.mxu0 %v40
  %49 = vmatpush.msra.mxu0 %v39
  %50 = vmatpush.msra.mxu0 %v38
  %51 = vmatpush.msra.mxu0 %v37
  %52 = vmatpush.msra.mxu0 %v36
  %53 = vmatpush.msra.mxu0 %v35
  %54 = vmatpush.msra.mxu0 %v34
  %55 = vmatpush.msra.mxu0 %v33
  %56 = vmatpush.msra.mxu0 %v32
  %57 = vmatpush.msra.mxu0 %v31
  %58 = vmatpush.msra.mxu0 %v30
  %59 = vmatpush.msra.mxu0 %v29
  %60 = vmatpush.msra.mxu0 %v28
  %61 = vmatmul.f32.gmra.mxu0 %v26
  %v62 = vpop.f32.mrf.mxu0
  %v63 = vadd.f32 %v44, %v62
  %64 = vdwg.mxu0
  %v65 = vmax.f32 %v63, 0.0
  %v66 = vld [vmem:[%s3] sm:$0xff]
  %v67 = vld [vmem:[%s3 + $0x8] sm:$0xff]
  %v68 = vld [vmem:[%s3 + $0x10] sm:$0xff]
  %v69 = vld [vmem:[%s3 + $0x18] sm:$0xff]
  %v70 = vld [vmem:[%s3 + $0x20] sm:$0xff]
  %v71 = vld [vmem:[%s3 + $0x28] sm:$0xff]
  %v72 = vld [vmem:[%s3 + $0x30] sm:$0xff]
  %v73 = vld [vmem:[%s3 + $0x38] sm:$0xff]
  %v74 = vld [vmem:[%s3 + $0x40] sm:$0xff]
  %v75 = vld [vmem:[%s3 + $0x48] sm:$0xff]
  %v76 = vld [vmem:[%s3 + $0x50] sm:$0xff]
  %v77 = vld [vmem:[%s3 + $0x58] sm:$0xff]
  %v78 = vld [vmem:[%s3 + $0x60] sm:$0xff]
  %v79 = vld [vmem:[%s3 + $0x68] sm:$0xff]
  %v80 = vld [vmem:[%s3 + $0x70] sm:$0xff]
  %v81 = vld [vmem:[%s3 + $0x78] sm:$0xff]
  %v82 = vperm.slane %v27, 1
  %83 = vmatpush.msra.mxu0 %v81
  %84 = vmatpush.msra.mxu0 %v80
  %85 = vmatpush.msra.mxu0 %v79
  %86 = vmatpush.msra.mxu0 %v78
  %87 = vmatpush.msra.mxu0 %v77
  %88 = vmatpush.msra.mxu0 %v76
  %89 = vmatpush.msra.mxu0 %v75
  %90 = vmatpush.msra.mxu0 %v74
  %91 = vmatpush.msra.mxu0 %v73
  %92 = vmatpush.msra.mxu0 %v72
  %93 = vmatpush.msra.mxu0 %v71
  %94 = vmatpush.msra.mxu0 %v70
  %95 = vmatpush.msra.mxu0 %v69
  %96 = vmatpush.msra.mxu0 %v68
  %97 = vmatpush.msra.mxu0 %v67
  %98 = vmatpush.msra.mxu0 %v66
  %99 = vmatmul.f32.gmra.mxu0 %v65
  %v100 = vpop.f32.mrf.mxu0
  %v101 = vadd.f32 %v82, %v100
  %102 = vdwg.mxu0
  %v103 = vmax.f32 %v101, 0.0
  %v104 = vld [vmem:[%s4] sm:$0xff]
  %v105 = vld [vmem:[%s4 + $0x8] sm:$0xff]
  %v106 = vld [vmem:[%s4 + $0x10] sm:$0xff]
  %v107 = vld [vmem:[%s4 + $0x18] sm:$0xff]
  %v108 = vld [vmem:[%s4 + $0x20] sm:$0xff]
  %v109 = vld [vmem:[%s4 + $0x28] sm:$0xff]
  %v110 = vld [vmem:[%s4 + $0x30] sm:$0xff]
  %v111 = vld [vmem:[%s4 + $0x38] sm:$0xff]
  %v112 = vld [vmem:[%s4 + $0x40] sm:$0xff]
  %v113 = vld [vmem:[%s4 + $0x48] sm:$0xff]
  %v114 = vld [vmem:[%s4 + $0x50] sm:$0xff]
  %v115 = vld [vmem:[%s4 + $0x58] sm:$0xff]
  %v116 = vld [vmem:[%s4 + $0x60] sm:$0xff]
  %v117 = vld [vmem:[%s4 + $0x68] sm:$0xff]
  %v118 = vld [vmem:[%s4 + $0x70] sm:$0xff]
  %v119 = vld [vmem:[%s4 + $0x78] sm:$0xff]
  %v120 = vperm.slane %v27, 2
  %121 = vmatpush.msra.mxu0 %v119
  %122 = vmatpush.msra.mxu0 %v118
  %123 = vmatpush.msra.mxu0 %v117
  %124 = vmatpush.msra.mxu0 %v116
  %125 = vmatpush.msra.mxu0 %v115
  %126 = vmatpush.msra.mxu0 %v114
  %127 = vmatpush.msra.mxu0 %v113
  %128 = vmatpush.msra.mxu0 %v112
  %129 = vmatpush.msra.mxu0 %v111
  %130 = vmatpush.msra.mxu0 %v110
  %131 = vmatpush.msra.mxu0 %v109
  %132 = vmatpush.msra.mxu0 %v108
  %133 = vmatpush.msra.mxu0 %v107
  %134 = vmatpush.msra.mxu0 %v106
  %135 = vmatpush.msra.mxu0 %v105
  %136 = vmatpush.msra.mxu0 %v104
  %137 = vmatmul.f32.gmra.mxu0 %v103
  %v138 = vpop.f32.mrf.mxu0
  %v139 = vadd.f32 %v120, %v138
  %140 = vdwg.mxu0
  %v141 = vmax.f32 %v139, 0.0
  %v142 = vld [vmem:[%s5] sm:$0xff]
  %v143 = vld [vmem:[%s5 + $0x8] sm:$0xff]
  %v144 = vld [vmem:[%s5 + $0x10] sm:$0xff]
  %v145 = vld [vmem:[%s5 + $0x18] sm:$0xff]
  %v146 = vld [vmem:[%s5 + $0x20] sm:$0xff]
  %v147 = vld [vmem:[%s5 + $0x28] sm:$0xff]
  %v148 = vld [vmem:[%s5 + $0x30] sm:$0xff]
  %v149 = vld [vmem:[%s5 + $0x38] sm:$0xff]
  %v150 = vld [vmem:[%s5 + $0x40] sm:$0xff]
  %v151 = vld [vmem:[%s5 + $0x48] sm:$0xff]
  %v152 = vld [vmem:[%s5 + $0x50] sm:$0xff]
  %v153 = vld [vmem:[%s5 + $0x58] sm:$0xff]
  %v154 = vld [vmem:[%s5 + $0x60] sm:$0xff]
  %v155 = vld [vmem:[%s5 + $0x68] sm:$0xff]
  %v156 = vld [vmem:[%s5 + $0x70] sm:$0xff]
  %v157 = vld [vmem:[%s5 + $0x78] sm:$0xff]
  %v158 = vld [vmem:[%s5 + $0x80] sm:$0xff]
  %v159 = vld [vmem:[%s5 + $0x88] sm:$0xff]
  %v160 = vld [vmem:[%s5 + $0x90] sm:$0xff]
  %v161 = vld [vmem:[%s5 + $0x98] sm:$0xff]
  %v162 = vld [vmem:[%s5 + $0xa0] sm:$0xff]
  %v163 = vld [vmem:[%s5 + $0xa8] sm:$0xff]
  %v164 = vld [vmem:[%s5 + $0xb0] sm:$0xff]
  %v165 = vld [vmem:[%s5 + $0xb8] sm:$0xff]
  %v166 = vld [vmem:[%s5 + $0xc0] sm:$0xff]
  %v167 = vld [vmem:[%s5 + $0xc8] sm:$0xff]
  %v168 = vld [vmem:[%s5 + $0xd0] sm:$0xff]
  %v169 = vld [vmem:[%s5 + $0xd8] sm:$0xff]
  %v170 = vld [vmem:[%s5 + $0xe0] sm:$0xff]
  %v171 = vld [vmem:[%s5 + $0xe8] sm:$0xff]
  %v172 = vld [vmem:[%s5 + $0xf0] sm:$0xff]
  %v173 = vld [vmem:[%s5 + $0xf8] sm:$0xff]
  %v174 = vld [vmem:[%s5 + $0x100] sm:$0xff]
  %v175 = vld [vmem:[%s5 + $0x108] sm:$0xff]
  %v176 = vld [vmem:[%s5 + $0x110] sm:$0xff]
  %v177 = vld [vmem:[%s5 + $0x118] sm:$0xff]
  %v178 = vld [vmem:[%s5 + $0x120] sm:$0xff]
  %v179 = vld [vmem:[%s5 + $0x128] sm:$0xff]
  %v180 = vld [vmem:[%s5 + $0x130] sm:$0xff]
  %v181 = vld [vmem:[%s5 + $0x138] sm:$0xff]
  %v182 = vld [vmem:[%s5 + $0x140] sm:$0xff]
  %v183 = vld [vmem:[%s5 + $0x148] sm:$0xff]
  %v184 = vld [vmem:[%s5 + $0x150] sm:$0xff]
  %v185 = vld [vmem:[%s5 + $0x158] sm:$0xff]
  %v186 = vld [vmem:[%s5 + $0x160] sm:$0xff]
  %v187 = vld [vmem:[%s5 + $0x168] sm:$0xff]
  %v188 = vld [vmem:[%s5 + $0x170] sm:$0xff]
  %v189 = vld [vmem:[%s5 + $0x178] sm:$0xff]
  %v190 = vperm.slane %v27, 3
  %191 = vmatpush.msra.mxu0 %v157
  %192 = vmatpush.msra.mxu0 %v156
  %193 = vmatpush.msra.mxu0 %v155
  %194 = vmatpush.msra.mxu0 %v154
  %195 = vmatpush.msra.mxu0 %v153
  %196 = vmatpush.msra.mxu0 %v152
  %197 = vmatpush.msra.mxu0 %v151
  %198 = vmatpush.msra.mxu0 %v150
  %199 = vmatpush.msra.mxu0 %v149
  %200 = vmatpush.msra.mxu0 %v148
  %201 = vmatpush.msra.mxu0 %v147
  %202 = vmatpush.msra.mxu0 %v146
  %203 = vmatpush.msra.mxu0 %v145
  %204 = vmatpush.msra.mxu0 %v144
  %205 = vmatpush.msra.mxu0 %v143
  %206 = vmatpush.msra.mxu0 %v142
  %207 = vmatmul.f32.gmra.mxu0 %v65
  %v208 = vpop.f32.mrf.mxu0
  %v209 = vadd.f32 %v190, %v208
  %210 = vdwg.mxu0
  %211 = vmatpush.msra.mxu0 %v173
  %212 = vmatpush.msra.mxu0 %v172
  %213 = vmatpush.msra.mxu0 %v171
  %214 = vmatpush.msra.mxu0 %v170
  %215 = vmatpush.msra.mxu0 %v169
  %216 = vmatpush.msra.mxu0 %v168
  %217 = vmatpush.msra.mxu0 %v167
  %218 = vmatpush.msra.mxu0 %v166
  %219 = vmatpush.msra.mxu0 %v165
  %220 = vmatpush.msra.mxu0 %v164
  %221 = vmatpush.msra.mxu0 %v163
  %222 = vmatpush.msra.mxu0 %v162
  %223 = vmatpush.msra.mxu0 %v161
  %224 = vmatpush.msra.mxu0 %v160
  %225 = vmatpush.msra.mxu0 %v159
  %226 = vmatpush.msra.mxu0 %v158
  %227 = vmatmul.f32.gmra.mxu0 %v103
  %v228 = vpop.f32.mrf.mxu0
  %v229 = vadd.f32 %v209, %v228
  %230 = vdwg.mxu0
  %231 = vmatpush.msra.mxu0 %v189
  %232 = vmatpush.msra.mxu0 %v188
  %233 = vmatpush.msra.mxu0 %v187
  %234 = vmatpush.msra.mxu0 %v186
  %235 = vmatpush.msra.mxu0 %v185
  %236 = vmatpush.msra.mxu0 %v184
  %237 = vmatpush.msra.mxu0 %v183
  %238 = vmatpush.msra.mxu0 %v182
  %239 = vmatpush.msra.mxu0 %v181
  %240 = vmatpush.msra.mxu0 %v180
  %241 = vmatpush.msra.mxu0 %v179
  %242 = vmatpush.msra.mxu0 %v178
  %243 = vmatpush.msra.mxu0 %v177
  %244 = vmatpush.msra.mxu0 %v176
  %245 = vmatpush.msra.mxu0 %v175
  %246 = vmatpush.msra.mxu0 %v174
  %247 = vmatmul.f32.gmra.mxu0 %v141
  %v248 = vpop.f32.mrf.mxu0
  %v249 = vadd.f32 %v229, %v248
  %250 = vdwg.mxu0
  %v251 = vld [vmem:[%s1] sm:$0xff]
  %v252 = vlaneseq
  %v253 = vand.u32 %v252, 127
  %254 = vset.pattern.permute.xlu0 0
  %255 = vperm.xlu0 %254, %v251
  %v256 = vpop.permute.xlu0 %255
  %vm257 = vcmp.eq.s32.totalorder %v253, %v256
  %v258 = vsel %vm257, 1, 0
  %v259 = vcvt.s32.f32 %v258
  %vm260 = vcmask 130048
  %v261 = vsel %vm260, %v249, -inf
  %262 = vmax.xlane.f32.xlu0 %v261
  %v263 = vpop.xlane.xlu0 %262
  %v264 = vsub.f32 %v249, %v263
  %v265 = vmul.f32 %v264, 1.442695
  %v266 = vpow.pop %v265
  %v267 = vsel %vm260, %v266, 0.0
  %268 = vadd.xlane.f32.xlu0 %v267
  %v269 = vpop.xlane.xlu0 %268
  %v270 = vlog2.pop %v269
  %v271 = vmul.f32 %v270, 0.6931472
  %v272 = vsub.f32 %v264, %v271
  %v273 = vmul.f32 %v272, 1.442695
  %v274 = vpow.pop %v273
  %v275 = vmul.f32 %v274, %v272
  %v276 = vsel %vm260, %v275, 0.0
  %277 = vadd.xlane.f32.xlu0 %v276
  %v278 = vpop.xlane.xlu0 %277
  %v279 = vrot.slane %v278, 4
  %v280 = vadd.f32 %v278, %v279
  %v281 = vrot.slane %v280, 2
  %v282 = vadd.f32 %v280, %v281
  %v283 = vrot.slane %v282, 1
  %v284 = vadd.f32 %v282, %v283
  %v285 = vmul.f32 %v284, 0.125
  %v286 = vadd.f32 %v263, %v271
  %v287 = vmul.f32 %v259, %v249
  %v288 = vsel %vm260, %v287, 0.0
  %289 = vadd.xlane.f32.xlu0 %v288
  %v290 = vpop.xlane.xlu0 %289
  %v291 = vsub.f32 %v286, %v290
  %v292 = vrot.slane %v291, 4
  %v293 = vadd.f32 %v291, %v292
  %v294 = vrot.slane %v293, 2
  %v295 = vadd.f32 %v293, %v294
  %v296 = vrot.slane %v295, 1
  %v297 = vadd.f32 %v295, %v296
  %v298 = vmul.f32 %v297, 0.125
  %vm299 = vcmask 261248
  %v300 = vsel %vm299, %v249, -inf
  %301 = vmax.xlane.f32.xlu0 %v300
  %v302 = vpop.xlane.xlu0 %301
  %v303 = vsub.f32 %v249, %v302
  %v304 = vmul.f32 %v303, 1.442695
  %v305 = vpow.pop %v304
  %307 = vrot.lane.b32.xlu0 %v305, 112
  %v308 = vpop.permute.xlu0 %307
  %v310 = vsel %vm260, %v308, 0.0
  %311 = vadd.xlane.f32.xlu0 %v310
  %v312 = vpop.xlane.xlu0 %311
  %v313 = vlog2.pop %v312
  %v314 = vmul.f32 %v313, 0.6931472
  %v315 = vsub.f32 %v303, %v314
  %v316 = vmul.f32 %v315, 1.442695
  %v317 = vpow.pop %v316
  %v318 = vmul.f32 %v317, %v315
  %320 = vrot.lane.b32.xlu0 %v318, 112
  %v321 = vpop.permute.xlu0 %320
  %v323 = vsel %vm260, %v321, 0.0
  %324 = vadd.xlane.f32.xlu0 %v323
  %v325 = vpop.xlane.xlu0 %324
  %v326 = vrot.slane %v325, 4
  %v327 = vadd.f32 %v325, %v326
  %v328 = vrot.slane %v327, 2
  %v329 = vadd.f32 %v327, %v328
  %v330 = vrot.slane %v329, 1
  %v331 = vadd.f32 %v329, %v330
  %v332 = vmul.f32 %v331, 0.125
  %v333 = vadd.f32 %v302, %v314
  %335 = vrot.lane.b32.xlu0 %v249, 112
  %v336 = vpop.permute.xlu0 %335
  %v338 = vmul.f32 %v259, %v336
  %v339 = vsel %vm260, %v338, 0.0
  %340 = vadd.xlane.f32.xlu0 %v339
  %v341 = vpop.xlane.xlu0 %340
  %v342 = vsub.f32 %v333, %v341
  %v343 = vrot.slane %v342, 4
  %v344 = vadd.f32 %v342, %v343
  %v345 = vrot.slane %v344, 2
  %v346 = vadd.f32 %v344, %v345
  %v347 = vrot.slane %v346, 1
  %v348 = vadd.f32 %v346, %v347
  %v349 = vmul.f32 %v348, 0.125
  %vm350 = vcmask 392448
  %v351 = vsel %vm350, %v249, -inf
  %352 = vmax.xlane.f32.xlu0 %v351
  %v353 = vpop.xlane.xlu0 %352
  %v354 = vsub.f32 %v249, %v353
  %v355 = vmul.f32 %v354, 1.442695
  %v356 = vpow.pop %v355
  %358 = vrot.lane.b32.xlu0 %v356, 96
  %v359 = vpop.permute.xlu0 %358
  %v361 = vsel %vm260, %v359, 0.0
  %362 = vadd.xlane.f32.xlu0 %v361
  %v363 = vpop.xlane.xlu0 %362
  %v364 = vlog2.pop %v363
  %v365 = vmul.f32 %v364, 0.6931472
  %v366 = vsub.f32 %v354, %v365
  %v367 = vmul.f32 %v366, 1.442695
  %v368 = vpow.pop %v367
  %v369 = vmul.f32 %v368, %v366
  %371 = vrot.lane.b32.xlu0 %v369, 96
  %v372 = vpop.permute.xlu0 %371
  %v374 = vsel %vm260, %v372, 0.0
  %375 = vadd.xlane.f32.xlu0 %v374
  %v376 = vpop.xlane.xlu0 %375
  %v377 = vrot.slane %v376, 4
  %v378 = vadd.f32 %v376, %v377
  %v379 = vrot.slane %v378, 2
  %v380 = vadd.f32 %v378, %v379
  %v381 = vrot.slane %v380, 1
  %v382 = vadd.f32 %v380, %v381
  %v383 = vmul.f32 %v382, 0.125
  %v384 = vadd.f32 %v353, %v365
  %385 = vrot.lane.b32.xlu0 %v249, 96
  %v386 = vpop.permute.xlu0 %385
  %v388 = vmul.f32 %v259, %v386
  %v389 = vsel %vm260, %v388, 0.0
  %390 = vadd.xlane.f32.xlu0 %v389
  %v391 = vpop.xlane.xlu0 %390
  %v392 = vsub.f32 %v384, %v391
  %v393 = vrot.slane %v392, 4
  %v394 = vadd.f32 %v392, %v393
  %v395 = vrot.slane %v394, 2
  %v396 = vadd.f32 %v394, %v395
  %v397 = vrot.slane %v396, 1
  %v398 = vadd.f32 %v396, %v397
  %v399 = vmul.f32 %v398, 0.125
  %v400 = vadd.f32 %v298, %v349
  %v401 = vadd.f32 %v400, %v399
  %v402 = vmul.f32 %v27, %v401
  %v403 = vmul.f32 %v27, 3.0
  %405 = vrot.lane.b32.xlu0 %v403, 127
  %v406 = vpop.permute.xlu0 %405
  %v408 = vadd.f32 %v402, %v406
  %v409 = vmul.f32 %v408, 0.33333334
  %vm410 = vcmp.eq.s32.totalorder %v253, 0
  %412 = vset.pattern.permute.xlu0 0
  %413 = vperm.xlu0 %412, %v409
  %v414 = vpop.permute.xlu0 %413
  %v416 = vsel %vm410, %v414, 0.0
  %vm417 = vcmp.eq.s32.totalorder %v253, 1
  %v418 = vsel %vm417, %v285, %v416
  %vm419 = vcmp.eq.s32.totalorder %v253, 2
  %v420 = vsel %vm419, %v332, %v418
  %vm421 = vcmp.eq.s32.totalorder %v253, 3
  %v422 = vsel %vm421, %v383, %v420
  %423 = vst [vmem:[%s7 - $0x4] sm:$0x10] %v422
  // Predicated region
  $region30: #{three_layer_bn_forward.1} parent=0 // pred_check
    _
  $region31: #{three_layer_bn_forward.1} parent=0 // pred_check_branch
    %425 = sbr.rel (0) target = $region33
  $region32: #{three_layer_bn_forward.1} parent=0 // pred_region
    _
  $region33: #{three_layer_bn_forward.1} parent=0 // pred_fallthru
    _
  // Predicated region
  $region34: #{three_layer_bn_forward.1} parent=0 // pred_check
    _
  $region35: #{three_layer_bn_forward.1} parent=0 // pred_check_branch
    %427 = sbr.rel (0) target = $region37
  $region36: #{three_layer_bn_forward.1} parent=0 // pred_region
    _
  $region37: #{three_layer_bn_forward.1} parent=0 // pred_fallthru
    _

</llo_original>
